<compile_context>
chip_gen: v7x
topology: tpu7x:2x2x1
jax: 0.10.0
libtpu: 0.0.40
codegen_flags: <defaults>
</compile_context>

<pallas_src>
import functools

import jax
import jax.numpy as jnp
from jax import lax
from jax.experimental import pallas as pl
from jax.experimental.pallas import tpu as pltpu

LN_EPS = 1e-5


def _gelu(x, approximate=False):
    if approximate:
        # torch nn.GELU(approximate='tanh'); tanh runs on the (otherwise idle) EUP slot.
        k = 0.7978845608028654  # sqrt(2/pi)
        return 0.5 * x * (1.0 + jnp.tanh(k * (x + 0.044715 * x * x * x)))
    # Exact erf form == PyTorch nn.GELU() default.
    return 0.5 * x * (1.0 + lax.erf(x * 0.7071067811865476))


def _layernorm(x, gamma, beta):
    # Var = E[x^2] - E[x]^2: two *independent* cross-lane reductions (overlap on XLU).
    mean = jnp.mean(x, axis=-1, keepdims=True)
    mean_sq = jnp.mean(x * x, axis=-1, keepdims=True)
    var = jnp.maximum(mean_sq - mean * mean, 0.0)
    return (x - mean) * lax.rsqrt(var + LN_EPS) * gamma + beta


def mixer_block_kernel(
    x_ref,      # (Bb, T, C)  input block
    gamma_ref,  # (1, C)      LN gamma
    beta_ref,   # (1, C)      LN beta
    w1t_ref,    # (Ht, T)     tokens fc1 weight (PyTorch (out,in)), compute dtype
    b1t_ref,    # (Ht, 1)
    w2t_ref,    # (T, Ht)     tokens fc2 weight, compute dtype
    b2t_ref,    # (T, 1)
    w1c_ref,    # (C, Hc)     channels fc1 weight, PRE-TRANSPOSED, compute dtype
    b1c_ref,    # (1, Hc)
    w2c_ref,    # (Hc, C)     channels fc2 weight, PRE-TRANSPOSED, compute dtype
    b2c_ref,    # (1, C)
    o_ref,      # (Bb, T, C)  output block
    *,
    approximate_gelu=False,
):
    bb, t, c = x_ref.shape
    cdt = w1t_ref.dtype  # matmul operand dtype (bf16 by default)

    x = x_ref[...].astype(jnp.float32)          # (Bb, T, C)
    gamma = gamma_ref[...].astype(jnp.float32)  # (1, C) broadcasts over (Bb,T,C)
    beta = beta_ref[...].astype(jnp.float32)

    # ---------------- token-mixing branch (batch-folded along lanes) ----------------
    y = _layernorm(x, gamma, beta).astype(cdt)                        # (Bb, T, C)
    # Fold batch into the lane axis: (T, Bb*C).  Lane-axis concat, no transpose.
    y_cat = jnp.concatenate([y[b] for b in range(bb)], axis=-1)       # (T, Bb*C)
    h = jnp.dot(w1t_ref[...], y_cat, preferred_element_type=jnp.float32)   # (Ht, Bb*C)
    h = _gelu(h + b1t_ref[...], approximate_gelu).astype(cdt)
    ytok = jnp.dot(w2t_ref[...], h, preferred_element_type=jnp.float32)    # (T, Bb*C)
    ytok = ytok + b2t_ref[...]
    # Unfold back to (Bb, T, C) - static lane slices at multiples of C.
    tok = jnp.stack([ytok[:, b * c:(b + 1) * c] for b in range(bb)], axis=0)

    out = x + tok                                                     # first residual, f32

    # ---------------- channel-mixing branch (batch folded over rows) ----------------
    y2 = _layernorm(out, gamma, beta).astype(cdt).reshape(bb * t, c)  # (Bb*T, C)
    h2 = jnp.dot(y2, w1c_ref[...], preferred_element_type=jnp.float32)     # (Bb*T, Hc)
    h2 = _gelu(h2 + b1c_ref[...], approximate_gelu).astype(cdt)
    y_ch = jnp.dot(h2, w2c_ref[...], preferred_element_type=jnp.float32)   # (Bb*T, C)
    y_ch = y_ch + b2c_ref[...]

    o_ref[...] = (out + y_ch.reshape(bb, t, c)).astype(o_ref.dtype)


def _chip_profile():
    """Return (two_tensorcores, vmem_cap_bytes) for the current TPU generation."""
    try:
        kind = jax.devices()[0].device_kind.lower()
    except Exception:  # pragma: no cover - defensive
        kind = ""
    if "v7" in kind:
        # v7x: 2 TCs/chip, 64 MiB VMEM per TC -> leave headroom, cap ~48 MiB.
        return True, 48 << 20
    # v5e / v6e (and older): single TC per chip, 128 MiB VMEM -> cap ~100 MiB.
    return False, 100 << 20


def _choose_block_batch(bs, T, C, Ht, Hc, in_bytes, out_bytes, *,
                        two_cores, act_budget_bytes):
    """Pick the per-grid-step batch (must divide bs)."""
    def act_bytes(bb):
        # Double-buffered pipeline I/O + rough in-kernel f32 temporaries.
        io = 2 * bb * T * C * (in_bytes + out_bytes)
        tmp = bb * T * (8 * C + 3 * Hc + Ht) * 4
        return io + tmp

    divisors = [d for d in range(1, bs + 1) if bs % d == 0]
    fits = [d for d in divisors if act_bytes(d) <= act_budget_bytes] or [1]
    if two_cores:
        # v7x: keep an even number of grid steps so both TensorCores get work,
        # and among those take the largest bb (largest folded matmul M = bb*T).
        even = [d for d in fits if bs // d >= 2 and (bs // d) % 2 == 0]
        return max(even) if even else max(fits)
    # v5e/v6e: the grid is a serial loop -> one grid step if it fits VMEM.
    return max(fits)


def mixer_block(x, params, *, compute_dtype=jnp.bfloat16, block_batch=None,
                approximate_gelu=False):
    """x: (bs, tokens, channels).  params in PyTorch Linear layout (out, in)."""
    bs, T, C = x.shape
    gamma, beta, w1t, b1t, w2t, b2t, w1c, b1c, w2c, b2c = params
    Ht = w1t.shape[0]
    Hc = w1c.shape[0]

    in_bytes = jnp.dtype(x.dtype).itemsize
    out_bytes = in_bytes  # output dtype follows input dtype

    two_cores, vmem_cap = _chip_profile()

    # Pre-transpose the channel-MLP weights once on the host/XLA side and cast
    # matmul operands to the compute dtype (halves resident weight VMEM too).
    w1t_k = w1t.astype(compute_dtype)        # (Ht, T)
    w2t_k = w2t.astype(compute_dtype)        # (T, Ht)
    w1c_k = w1c.T.astype(compute_dtype)      # (C, Hc)
    w2c_k = w2c.T.astype(compute_dtype)      # (Hc, C)

    wbytes = jnp.dtype(compute_dtype).itemsize
    wmem_one = (Ht * T + T * Ht + C * Hc + Hc * C) * wbytes
    small = (3 * C + Ht + T + Hc) * 4 * 2
    # Single-buffer the (block-invariant) weights when double-buffering them
    # would burn > 8 MiB of VMEM (production Mixer sizes; no cost, constant index_map).
    single_buf_w = (2 * wmem_one) > (8 << 20)
    weight_bufs = 1 if single_buf_w else 2
    headroom = 8 << 20

    act_budget = max(vmem_cap - weight_bufs * wmem_one - small - headroom, 4 << 20)

    if block_batch is None:
        bb = _choose_block_batch(bs, T, C, Ht, Hc, in_bytes, out_bytes,
                                 two_cores=two_cores, act_budget_bytes=act_budget)
    else:
        bb = block_batch
    if bs % bb != 0:
        raise ValueError(f"block_batch={bb} must divide bs={bs}")

    # ---- VMEM limit (no double-counted buffering) ----
    act_used = 2 * bb * T * C * (in_bytes + out_bytes) + bb * T * (8 * C + 3 * Hc + Ht) * 4
    vmem_needed = weight_bufs * wmem_one + small + act_used + headroom
    vmem_limit = int(min(vmem_cap, max(32 << 20, vmem_needed)))

    # ---- advisory cost estimate for the XLA scheduler ----
    flops = 4 * bs * T * C * (Ht + Hc)
    transcendentals = bs * (Ht * C + T * Hc + 4 * T)
    bytes_accessed = bs * T * C * (in_bytes + out_bytes) + wmem_one + small

    def full(shape):
        return pl.BlockSpec(shape, lambda i: (0,) * len(shape))

    def wspec(shape):
        if single_buf_w:
            return pl.BlockSpec(shape, lambda i: (0,) * len(shape),
                                pipeline_mode=pl.Buffered(1))
        return full(shape)

    kernel = functools.partial(mixer_block_kernel, approximate_gelu=approximate_gelu)

    return pl.pallas_call(
        kernel,
        out_shape=jax.ShapeDtypeStruct((bs, T, C), x.dtype),
        grid_spec=pltpu.PrefetchScalarGridSpec(
            num_scalar_prefetch=0,
            grid=(bs // bb,),
            in_specs=[
                pl.BlockSpec((bb, T, C), lambda i: (i, 0, 0)),  # x
                full((1, C)),      # gamma
                full((1, C)),      # beta
                wspec((Ht, T)),    # w1t
                full((Ht, 1)),     # b1t
                wspec((T, Ht)),    # w2t
                full((T, 1)),      # b2t
                wspec((C, Hc)),    # w1c (pre-transposed)
                full((1, Hc)),     # b1c
                wspec((Hc, C)),    # w2c (pre-transposed)
                full((1, C)),      # b2c
            ],
            out_specs=pl.BlockSpec((bb, T, C), lambda i: (i, 0, 0)),
        ),
        compiler_params=pltpu.CompilerParams(
            dimension_semantics=("parallel",),
            vmem_limit_bytes=vmem_limit,
        ),
        cost_estimate=pl.CostEstimate(
            flops=flops,
            transcendentals=transcendentals,
            bytes_accessed=bytes_accessed,
        ),
    )(x, gamma.reshape(1, C), beta.reshape(1, C),
      w1t_k, b1t.reshape(Ht, 1), w2t_k, b2t.reshape(T, 1),
      w1c_k, b1c.reshape(1, Hc), w2c_k, b2c.reshape(1, C))


def mixer_block_ref(x, params, compute_dtype=jnp.float32, approximate_gelu=False):
    """Pure-JAX reference matching the PyTorch forward.

    compute_dtype=float32 reproduces the exact PyTorch math; bfloat16 mimics
    the kernel's mixed-precision policy (bf16 matmul operands, f32 accum).
    """
    gamma, beta, w1t, b1t, w2t, b2t, w1c, b1c, w2c, b2c = params
    cd = compute_dtype
    x = x.astype(jnp.float32)

    y = _layernorm(x, gamma, beta)
    yt = jnp.swapaxes(y, 1, 2)                                           # (bs, C, T)
    h = jnp.einsum('bct,ht->bch', yt.astype(cd), w1t.astype(cd),
                   preferred_element_type=jnp.float32) + b1t
    h = _gelu(h, approximate_gelu)
    yt = jnp.einsum('bch,th->bct', h.astype(cd), w2t.astype(cd),
                    preferred_element_type=jnp.float32) + b2t
    out = x + jnp.swapaxes(yt, 1, 2)                                     # (bs, T, C)

    y = _layernorm(out, gamma, beta)
    h = jnp.einsum('btc,hc->bth', y.astype(cd), w1c.astype(cd),
                   preferred_element_type=jnp.float32) + b1c
    h = _gelu(h, approximate_gelu)
    y = jnp.einsum('bth,ch->btc', h.astype(cd), w2c.astype(cd),
                   preferred_element_type=jnp.float32) + b2c
    return out + y


if __name__ == "__main__":
    # Small but lane-dense shapes consistent with
    # MixerBlock(tokens_mlp_dim, channels_mlp_dim, tokens_hidden_dim, channels_hidden_dim).
    bs, tokens, channels = 4, 16, 128
    tokens_hidden, channels_hidden = 32, 128

    key = jax.random.PRNGKey(0)
    ks = jax.random.split(key, 12)

    x = jax.random.normal(ks[0], (bs, tokens, channels), jnp.float32)

    # Deterministic synthetic parameters (PyTorch Linear layout: (out, in)).
    gamma = 1.0 + 0.1 * jax.random.normal(ks[1], (channels,), jnp.float32)
    beta = 0.1 * jax.random.normal(ks[2], (channels,), jnp.float32)
    w1t = 0.1 * jax.random.normal(ks[3], (tokens_hidden, tokens), jnp.float32)
    b1t = 0.1 * jax.random.normal(ks[4], (tokens_hidden,), jnp.float32)
    w2t = 0.1 * jax.random.normal(ks[5], (tokens, tokens_hidden), jnp.float32)
    b2t = 0.1 * jax.random.normal(ks[6], (tokens,), jnp.float32)
    w1c = 0.1 * jax.random.normal(ks[7], (channels_hidden, channels), jnp.float32)
    b1c = 0.1 * jax.random.normal(ks[8], (channels_hidden,), jnp.float32)
    w2c = 0.1 * jax.random.normal(ks[9], (channels, channels_hidden), jnp.float32)
    b2c = 0.1 * jax.random.normal(ks[10], (channels,), jnp.float32)

    params = (gamma, beta, w1t, b1t, w2t, b2t, w1c, b1c, w2c, b2c)

    out = jax.block_until_ready(mixer_block(x, params))
    assert out.shape == (bs, tokens, channels)

    # Tight check against a reference using the same mixed-precision policy.
    ref_mixed = mixer_block_ref(x, params, compute_dtype=jnp.bfloat16)
    assert jnp.allclose(out, ref_mixed, rtol=1e-2, atol=1e-2), \
        "mismatch vs mixed-precision reference"

    # Sanity check against the exact f32 / PyTorch semantics.
    ref_f32 = mixer_block_ref(x, params, compute_dtype=jnp.float32)
    assert jnp.allclose(out, ref_f32, rtol=5e-2, atol=5e-2), \
        "mismatch vs float32 reference"

    print("KERNEL_OK")
</pallas_src>

<mosaic_0001>
module attributes {stable_mosaic.version = 11 : i64} {
  func.func @mixer_block_kernel(%arg0: i32, %arg1: memref<4x16x128xf32, #tpu.memory_space<vmem>>, %arg2: memref<1x128xf32, #tpu.memory_space<vmem>>, %arg3: memref<1x128xf32, #tpu.memory_space<vmem>>, %arg4: memref<32x16xbf16, #tpu.memory_space<vmem>>, %arg5: memref<32x1xf32, #tpu.memory_space<vmem>>, %arg6: memref<16x32xbf16, #tpu.memory_space<vmem>>, %arg7: memref<16x1xf32, #tpu.memory_space<vmem>>, %arg8: memref<128x128xbf16, #tpu.memory_space<vmem>>, %arg9: memref<1x128xf32, #tpu.memory_space<vmem>>, %arg10: memref<128x128xbf16, #tpu.memory_space<vmem>>, %arg11: memref<1x128xf32, #tpu.memory_space<vmem>>, %arg12: memref<4x16x128xf32, #tpu.memory_space<vmem>>) attributes {dimension_semantics = [#tpu.dimension_semantics<parallel>], iteration_bounds = array<i64: 1>, scalar_prefetch = 0 : i64, scratch_operands = 0 : i64, tpu.core_type = #tpu.core_type<tc>, window_params = [{transform_indices = @transform_0, window_bounds = array<i64: 4, 16, 128>}, {pipeline_mode = #tpu.pipeline_mode<synchronous>, transform_indices = @transform_1, window_bounds = array<i64: 1, 128>}, {pipeline_mode = #tpu.pipeline_mode<synchronous>, transform_indices = @transform_2, window_bounds = array<i64: 1, 128>}, {pipeline_mode = #tpu.pipeline_mode<synchronous>, transform_indices = @transform_3, window_bounds = array<i64: 32, 16>}, {pipeline_mode = #tpu.pipeline_mode<synchronous>, transform_indices = @transform_4, window_bounds = array<i64: 32, 1>}, {pipeline_mode = #tpu.pipeline_mode<synchronous>, transform_indices = @transform_5, window_bounds = array<i64: 16, 32>}, {pipeline_mode = #tpu.pipeline_mode<synchronous>, transform_indices = @transform_6, window_bounds = array<i64: 16, 1>}, {pipeline_mode = #tpu.pipeline_mode<synchronous>, transform_indices = @transform_7, window_bounds = array<i64: 128, 128>}, {pipeline_mode = #tpu.pipeline_mode<synchronous>, transform_indices = @transform_8, window_bounds = array<i64: 1, 128>}, {pipeline_mode = #tpu.pipeline_mode<synchronous>, transform_indices = @transform_9, window_bounds = array<i64: 128, 128>}, {pipeline_mode = #tpu.pipeline_mode<synchronous>, transform_indices = @transform_10, window_bounds = array<i64: 1, 128>}, {transform_indices = @transform_11, window_bounds = array<i64: 4, 16, 128>}]} {
    %c0 = arith.constant 0 : index
    %c0_0 = arith.constant 0 : index
    %c0_1 = arith.constant 0 : index
    %0 = vector.load %arg1[%c0, %c0_0, %c0_1] : memref<4x16x128xf32, #tpu.memory_space<vmem>>, vector<4x16x128xf32>
    %c0_2 = arith.constant 0 : index
    %c0_3 = arith.constant 0 : index
    %1 = vector.load %arg2[%c0_2, %c0_3] : memref<1x128xf32, #tpu.memory_space<vmem>>, vector<1x128xf32>
    %c0_4 = arith.constant 0 : index
    %c0_5 = arith.constant 0 : index
    %2 = vector.load %arg3[%c0_4, %c0_5] : memref<1x128xf32, #tpu.memory_space<vmem>>, vector<1x128xf32>
    %cst = arith.constant dense<0.000000e+00> : vector<4x16xf32>
    %3 = vector.multi_reduction <add>, %0, %cst [2] : vector<4x16x128xf32> to vector<4x16xf32>
    %4 = vector.shape_cast %3 : vector<4x16xf32> to vector<4x16x1xf32>
    %cst_6 = arith.constant 1.280000e+02 : f32
    %5 = vector.broadcast %cst_6 : f32 to vector<4x16x1xf32>
    %6 = arith.divf %4, %5 : vector<4x16x1xf32>
    %7 = arith.mulf %0, %0 : vector<4x16x128xf32>
    %cst_7 = arith.constant dense<0.000000e+00> : vector<4x16xf32>
    %8 = vector.multi_reduction <add>, %7, %cst_7 [2] : vector<4x16x128xf32> to vector<4x16xf32>
    %9 = vector.shape_cast %8 : vector<4x16xf32> to vector<4x16x1xf32>
    %cst_8 = arith.constant 1.280000e+02 : f32
    %10 = vector.broadcast %cst_8 : f32 to vector<4x16x1xf32>
    %11 = arith.divf %9, %10 : vector<4x16x1xf32>
    %12 = arith.mulf %6, %6 : vector<4x16x1xf32>
    %13 = arith.subf %11, %12 : vector<4x16x1xf32>
    %cst_9 = arith.constant 0.000000e+00 : f32
    %14 = vector.broadcast %cst_9 : f32 to vector<4x16x1xf32>
    %15 = arith.maximumf %13, %14 : vector<4x16x1xf32>
    %16 = vector.broadcast %6 : vector<4x16x1xf32> to vector<4x16x128xf32>
    %17 = arith.subf %0, %16 : vector<4x16x128xf32>
    %cst_10 = arith.constant 9.99999974E-6 : f32
    %18 = vector.broadcast %cst_10 : f32 to vector<4x16x1xf32>
    %19 = arith.addf %15, %18 : vector<4x16x1xf32>
    %20 = math.rsqrt %19 : vector<4x16x1xf32>
    %21 = vector.broadcast %20 : vector<4x16x1xf32> to vector<4x16x128xf32>
    %22 = arith.mulf %17, %21 : vector<4x16x128xf32>
    %23 = vector.shape_cast %1 : vector<1x128xf32> to vector<1x1x128xf32>
    %24 = vector.broadcast %23 : vector<1x1x128xf32> to vector<4x16x128xf32>
    %25 = arith.mulf %22, %24 : vector<4x16x128xf32>
    %26 = vector.shape_cast %2 : vector<1x128xf32> to vector<1x1x128xf32>
    %27 = vector.broadcast %26 : vector<1x1x128xf32> to vector<4x16x128xf32>
    %28 = arith.addf %25, %27 : vector<4x16x128xf32>
    %29 = arith.truncf %28 : vector<4x16x128xf32> to vector<4x16x128xbf16>
    %30 = vector.extract_strided_slice %29 {offsets = [0, 0, 0], sizes = [1, 16, 128], strides = [1, 1, 1]} : vector<4x16x128xbf16> to vector<1x16x128xbf16>
    %31 = vector.shape_cast %30 : vector<1x16x128xbf16> to vector<16x128xbf16>
    %32 = vector.extract_strided_slice %29 {offsets = [1, 0, 0], sizes = [1, 16, 128], strides = [1, 1, 1]} : vector<4x16x128xbf16> to vector<1x16x128xbf16>
    %33 = vector.shape_cast %32 : vector<1x16x128xbf16> to vector<16x128xbf16>
    %34 = vector.extract_strided_slice %29 {offsets = [2, 0, 0], sizes = [1, 16, 128], strides = [1, 1, 1]} : vector<4x16x128xbf16> to vector<1x16x128xbf16>
    %35 = vector.shape_cast %34 : vector<1x16x128xbf16> to vector<16x128xbf16>
    %36 = vector.extract_strided_slice %29 {offsets = [3, 0, 0], sizes = [1, 16, 128], strides = [1, 1, 1]} : vector<4x16x128xbf16> to vector<1x16x128xbf16>
    %37 = vector.shape_cast %36 : vector<1x16x128xbf16> to vector<16x128xbf16>
    %38 = tpu.concatenate %31, %33, %35, %37 in 1 : vector<16x128xbf16>, vector<16x128xbf16>, vector<16x128xbf16>, vector<16x128xbf16> -> vector<16x512xbf16>
    %c0_11 = arith.constant 0 : index
    %c0_12 = arith.constant 0 : index
    %39 = vector.load %arg4[%c0_11, %c0_12] : memref<32x16xbf16, #tpu.memory_space<vmem>>, vector<32x16xbf16>
    %cst_13 = arith.constant dense<0.000000e+00> : vector<32x512xf32>
    %40 = tpu.matmul %39, %38, %cst_13 {dimension_numbers = #tpu.dot_dimension_numbers<[1], [0], [0], [1], [0, 0, 1, 1], [], []>} : vector<32x16xbf16>, vector<16x512xbf16>, vector<32x512xf32> -> vector<32x512xf32>
    %c0_14 = arith.constant 0 : index
    %c0_15 = arith.constant 0 : index
    %41 = vector.load %arg5[%c0_14, %c0_15] : memref<32x1xf32, #tpu.memory_space<vmem>>, vector<32x1xf32>
    %42 = vector.broadcast %41 : vector<32x1xf32> to vector<32x512xf32>
    %43 = arith.addf %40, %42 : vector<32x512xf32>
    %cst_16 = arith.constant 5.000000e-01 : f32
    %44 = vector.broadcast %cst_16 : f32 to vector<32x512xf32>
    %45 = arith.mulf %44, %43 : vector<32x512xf32>
    %cst_17 = arith.constant 0.707106769 : f32
    %46 = vector.broadcast %cst_17 : f32 to vector<32x512xf32>
    %47 = arith.mulf %43, %46 : vector<32x512xf32>
    %48 = math.erf %47 : vector<32x512xf32>
    %cst_18 = arith.constant 1.000000e+00 : f32
    %49 = vector.broadcast %cst_18 : f32 to vector<32x512xf32>
    %50 = arith.addf %49, %48 : vector<32x512xf32>
    %51 = arith.mulf %45, %50 : vector<32x512xf32>
    %52 = arith.truncf %51 : vector<32x512xf32> to vector<32x512xbf16>
    %c0_19 = arith.constant 0 : index
    %c0_20 = arith.constant 0 : index
    %53 = vector.load %arg6[%c0_19, %c0_20] : memref<16x32xbf16, #tpu.memory_space<vmem>>, vector<16x32xbf16>
    %cst_21 = arith.constant dense<0.000000e+00> : vector<16x512xf32>
    %54 = tpu.matmul %53, %52, %cst_21 {dimension_numbers = #tpu.dot_dimension_numbers<[1], [0], [0], [1], [0, 0, 1, 1], [], []>} : vector<16x32xbf16>, vector<32x512xbf16>, vector<16x512xf32> -> vector<16x512xf32>
    %c0_22 = arith.constant 0 : index
    %c0_23 = arith.constant 0 : index
    %55 = vector.load %arg7[%c0_22, %c0_23] : memref<16x1xf32, #tpu.memory_space<vmem>>, vector<16x1xf32>
    %56 = vector.broadcast %55 : vector<16x1xf32> to vector<16x512xf32>
    %57 = arith.addf %54, %56 : vector<16x512xf32>
    %58 = vector.extract_strided_slice %57 {offsets = [0, 0], sizes = [16, 128], strides = [1, 1]} : vector<16x512xf32> to vector<16x128xf32>
    %59 = vector.extract_strided_slice %57 {offsets = [0, 128], sizes = [16, 128], strides = [1, 1]} : vector<16x512xf32> to vector<16x128xf32>
    %60 = vector.extract_strided_slice %57 {offsets = [0, 256], sizes = [16, 128], strides = [1, 1]} : vector<16x512xf32> to vector<16x128xf32>
    %61 = vector.extract_strided_slice %57 {offsets = [0, 384], sizes = [16, 128], strides = [1, 1]} : vector<16x512xf32> to vector<16x128xf32>
    %62 = vector.shape_cast %58 : vector<16x128xf32> to vector<1x16x128xf32>
    %63 = vector.shape_cast %59 : vector<16x128xf32> to vector<1x16x128xf32>
    %64 = vector.shape_cast %60 : vector<16x128xf32> to vector<1x16x128xf32>
    %65 = vector.shape_cast %61 : vector<16x128xf32> to vector<1x16x128xf32>
    %66 = tpu.concatenate %62, %63, %64, %65 in 0 : vector<1x16x128xf32>, vector<1x16x128xf32>, vector<1x16x128xf32>, vector<1x16x128xf32> -> vector<4x16x128xf32>
    %67 = arith.addf %0, %66 : vector<4x16x128xf32>
    %cst_24 = arith.constant dense<0.000000e+00> : vector<4x16xf32>
    %68 = vector.multi_reduction <add>, %67, %cst_24 [2] : vector<4x16x128xf32> to vector<4x16xf32>
    %69 = vector.shape_cast %68 : vector<4x16xf32> to vector<4x16x1xf32>
    %cst_25 = arith.constant 1.280000e+02 : f32
    %70 = vector.broadcast %cst_25 : f32 to vector<4x16x1xf32>
    %71 = arith.divf %69, %70 : vector<4x16x1xf32>
    %72 = arith.mulf %67, %67 : vector<4x16x128xf32>
    %cst_26 = arith.constant dense<0.000000e+00> : vector<4x16xf32>
    %73 = vector.multi_reduction <add>, %72, %cst_26 [2] : vector<4x16x128xf32> to vector<4x16xf32>
    %74 = vector.shape_cast %73 : vector<4x16xf32> to vector<4x16x1xf32>
    %cst_27 = arith.constant 1.280000e+02 : f32
    %75 = vector.broadcast %cst_27 : f32 to vector<4x16x1xf32>
    %76 = arith.divf %74, %75 : vector<4x16x1xf32>
    %77 = arith.mulf %71, %71 : vector<4x16x1xf32>
    %78 = arith.subf %76, %77 : vector<4x16x1xf32>
    %cst_28 = arith.constant 0.000000e+00 : f32
    %79 = vector.broadcast %cst_28 : f32 to vector<4x16x1xf32>
    %80 = arith.maximumf %78, %79 : vector<4x16x1xf32>
    %81 = vector.broadcast %71 : vector<4x16x1xf32> to vector<4x16x128xf32>
    %82 = arith.subf %67, %81 : vector<4x16x128xf32>
    %cst_29 = arith.constant 9.99999974E-6 : f32
    %83 = vector.broadcast %cst_29 : f32 to vector<4x16x1xf32>
    %84 = arith.addf %80, %83 : vector<4x16x1xf32>
    %85 = math.rsqrt %84 : vector<4x16x1xf32>
    %86 = vector.broadcast %85 : vector<4x16x1xf32> to vector<4x16x128xf32>
    %87 = arith.mulf %82, %86 : vector<4x16x128xf32>
    %88 = vector.shape_cast %1 : vector<1x128xf32> to vector<1x1x128xf32>
    %89 = vector.broadcast %88 : vector<1x1x128xf32> to vector<4x16x128xf32>
    %90 = arith.mulf %87, %89 : vector<4x16x128xf32>
    %91 = vector.shape_cast %2 : vector<1x128xf32> to vector<1x1x128xf32>
    %92 = vector.broadcast %91 : vector<1x1x128xf32> to vector<4x16x128xf32>
    %93 = arith.addf %90, %92 : vector<4x16x128xf32>
    %94 = arith.truncf %93 : vector<4x16x128xf32> to vector<4x16x128xbf16>
    %95 = vector.shape_cast %94 : vector<4x16x128xbf16> to vector<64x128xbf16>
    %c0_30 = arith.constant 0 : index
    %c0_31 = arith.constant 0 : index
    %96 = vector.load %arg8[%c0_30, %c0_31] : memref<128x128xbf16, #tpu.memory_space<vmem>>, vector<128x128xbf16>
    %cst_32 = arith.constant dense<0.000000e+00> : vector<64x128xf32>
    %97 = tpu.matmul %95, %96, %cst_32 {dimension_numbers = #tpu.dot_dimension_numbers<[1], [0], [0], [1], [0, 0, 1, 1], [], []>} : vector<64x128xbf16>, vector<128x128xbf16>, vector<64x128xf32> -> vector<64x128xf32>
    %c0_33 = arith.constant 0 : index
    %c0_34 = arith.constant 0 : index
    %98 = vector.load %arg9[%c0_33, %c0_34] : memref<1x128xf32, #tpu.memory_space<vmem>>, vector<1x128xf32>
    %99 = vector.broadcast %98 : vector<1x128xf32> to vector<64x128xf32>
    %100 = arith.addf %97, %99 : vector<64x128xf32>
    %cst_35 = arith.constant 5.000000e-01 : f32
    %101 = vector.broadcast %cst_35 : f32 to vector<64x128xf32>
    %102 = arith.mulf %101, %100 : vector<64x128xf32>
    %cst_36 = arith.constant 0.707106769 : f32
    %103 = vector.broadcast %cst_36 : f32 to vector<64x128xf32>
    %104 = arith.mulf %100, %103 : vector<64x128xf32>
    %105 = math.erf %104 : vector<64x128xf32>
    %cst_37 = arith.constant 1.000000e+00 : f32
    %106 = vector.broadcast %cst_37 : f32 to vector<64x128xf32>
    %107 = arith.addf %106, %105 : vector<64x128xf32>
    %108 = arith.mulf %102, %107 : vector<64x128xf32>
    %109 = arith.truncf %108 : vector<64x128xf32> to vector<64x128xbf16>
    %c0_38 = arith.constant 0 : index
    %c0_39 = arith.constant 0 : index
    %110 = vector.load %arg10[%c0_38, %c0_39] : memref<128x128xbf16, #tpu.memory_space<vmem>>, vector<128x128xbf16>
    %cst_40 = arith.constant dense<0.000000e+00> : vector<64x128xf32>
    %111 = tpu.matmul %109, %110, %cst_40 {dimension_numbers = #tpu.dot_dimension_numbers<[1], [0], [0], [1], [0, 0, 1, 1], [], []>} : vector<64x128xbf16>, vector<128x128xbf16>, vector<64x128xf32> -> vector<64x128xf32>
    %c0_41 = arith.constant 0 : index
    %c0_42 = arith.constant 0 : index
    %112 = vector.load %arg11[%c0_41, %c0_42] : memref<1x128xf32, #tpu.memory_space<vmem>>, vector<1x128xf32>
    %113 = vector.broadcast %112 : vector<1x128xf32> to vector<64x128xf32>
    %114 = arith.addf %111, %113 : vector<64x128xf32>
    %115 = vector.shape_cast %114 : vector<64x128xf32> to vector<4x16x128xf32>
    %116 = arith.addf %67, %115 : vector<4x16x128xf32>
    %c0_43 = arith.constant 0 : index
    %c0_44 = arith.constant 0 : index
    %c0_45 = arith.constant 0 : index
    %117 = vector.load %arg12[%c0_43, %c0_44, %c0_45] : memref<4x16x128xf32, #tpu.memory_space<vmem>>, vector<4x16x128xf32>
    tpu.vector_store %arg12[%c0_43, %c0_44, %c0_45], %116 {strides = array<i32>} : memref<4x16x128xf32, #tpu.memory_space<vmem>>, vector<4x16x128xf32>,
    return
  }
  func.func @transform_0(%arg0: i32) -> (i32, i32, i32) {
    %c0_i32 = arith.constant 0 : i32
    %c0_i32_0 = arith.constant 0 : i32
    %c0_i32_1 = arith.constant 0 : i32
    return %arg0, %c0_i32, %c0_i32_0 : i32, i32, i32
  }
  func.func @transform_1(%arg0: i32) -> (i32, i32) {
    %c0_i32 = arith.constant 0 : i32
    %c0_i32_0 = arith.constant 0 : i32
    %c0_i32_1 = arith.constant 0 : i32
    return %c0_i32, %c0_i32_0 : i32, i32
  }
  func.func @transform_2(%arg0: i32) -> (i32, i32) {
    %c0_i32 = arith.constant 0 : i32
    %c0_i32_0 = arith.constant 0 : i32
    %c0_i32_1 = arith.constant 0 : i32
    return %c0_i32, %c0_i32_0 : i32, i32
  }
  func.func @transform_3(%arg0: i32) -> (i32, i32) {
    %c0_i32 = arith.constant 0 : i32
    %c0_i32_0 = arith.constant 0 : i32
    %c0_i32_1 = arith.constant 0 : i32
    return %c0_i32, %c0_i32_0 : i32, i32
  }
  func.func @transform_4(%arg0: i32) -> (i32, i32) {
    %c0_i32 = arith.constant 0 : i32
    %c0_i32_0 = arith.constant 0 : i32
    %c0_i32_1 = arith.constant 0 : i32
    return %c0_i32, %c0_i32_0 : i32, i32
  }
  func.func @transform_5(%arg0: i32) -> (i32, i32) {
    %c0_i32 = arith.constant 0 : i32
    %c0_i32_0 = arith.constant 0 : i32
    %c0_i32_1 = arith.constant 0 : i32
    return %c0_i32, %c0_i32_0 : i32, i32
  }
  func.func @transform_6(%arg0: i32) -> (i32, i32) {
    %c0_i32 = arith.constant 0 : i32
    %c0_i32_0 = arith.constant 0 : i32
    %c0_i32_1 = arith.constant 0 : i32
    return %c0_i32, %c0_i32_0 : i32, i32
  }
  func.func @transform_7(%arg0: i32) -> (i32, i32) {
    %c0_i32 = arith.constant 0 : i32
    %c0_i32_0 = arith.constant 0 : i32
    %c0_i32_1 = arith.constant 0 : i32
    return %c0_i32, %c0_i32_0 : i32, i32
  }
  func.func @transform_8(%arg0: i32) -> (i32, i32) {
    %c0_i32 = arith.constant 0 : i32
    %c0_i32_0 = arith.constant 0 : i32
    %c0_i32_1 = arith.constant 0 : i32
    return %c0_i32, %c0_i32_0 : i32, i32
  }
  func.func @transform_9(%arg0: i32) -> (i32, i32) {
    %c0_i32 = arith.constant 0 : i32
    %c0_i32_0 = arith.constant 0 : i32
    %c0_i32_1 = arith.constant 0 : i32
    return %c0_i32, %c0_i32_0 : i32, i32
  }
  func.func @transform_10(%arg0: i32) -> (i32, i32) {
    %c0_i32 = arith.constant 0 : i32
    %c0_i32_0 = arith.constant 0 : i32
    %c0_i32_1 = arith.constant 0 : i32
    return %c0_i32, %c0_i32_0 : i32, i32
  }
  func.func @transform_11(%arg0: i32) -> (i32, i32, i32) {
    %c0_i32 = arith.constant 0 : i32
    %c0_i32_0 = arith.constant 0 : i32
    %c0_i32_1 = arith.constant 0 : i32
    return %arg0, %c0_i32, %c0_i32_0 : i32, i32, i32
  }
}

</mosaic_0001>

<llo_original>
// kernel: tpu_custom_call.1
$region0: #{tpu_custom_call.1}
  #allocation0 [shape = 'u32[]', space=smem, size = 0x4, offset = 0x4, fixed_abs, tag = 'smem constant byte address 0x4 - core index']
  #allocation1 [shape = 'u32[144,128]{1,0:T(1,128)}', space=vmem, size = 0x12000, scoped, tag = 'internal scratch']
  %s0 = inlined_call_operand.vmem [shape: f32[4,16,128], index: 0, kind: input, shape index: {}]
  %s1 = inlined_call_operand.vmem [shape: f32[1,128], index: 1, kind: input, shape index: {}]
  %s2 = inlined_call_operand.vmem [shape: f32[1,128], index: 2, kind: input, shape index: {}]
  %s3 = inlined_call_operand.vmem [shape: bf16[32,16], index: 3, kind: input, shape index: {}]
  %s4 = inlined_call_operand.vmem [shape: f32[32,1], index: 4, kind: input, shape index: {}]
  %s5 = inlined_call_operand.vmem [shape: bf16[16,32], index: 5, kind: input, shape index: {}]
  %s6 = inlined_call_operand.vmem [shape: f32[16,1], index: 6, kind: input, shape index: {}]
  %s7 = inlined_call_operand.hbm [shape: bf16[128,128], index: 7, kind: input, shape index: {}]
  %s8 = inlined_call_operand.vmem [shape: f32[1,128], index: 8, kind: input, shape index: {}]
  %s9 = inlined_call_operand.hbm [shape: bf16[128,128], index: 9, kind: input, shape index: {}]
  %s10 = inlined_call_operand.vmem [shape: f32[1,128], index: 10, kind: input, shape index: {}]
  %s11 = inlined_call_operand.hbm [shape: f32[4,16,128], index: 11, kind: output, shape index: {}]
  %s12 = sld [smem:[#allocation0]]
  $region62: #{tpu_custom_call.1} parent=0
    _
  %s14 = ssub.s32 1, %s12
  %s15 = scalar_select 0, %s14, %s12
  $region1: #{tpu_custom_call.1} parent=0
    #allocation2 [shape = 'u8[32768]{0}', space=vmem, size = 0x8000, scoped, tag = 'input window, operand 7, single buffered']
    #allocation3 [shape = 's32[1]{0}', space=sflag, size = 0x4, scoped, tag = 'scoped memory for tpu_custom_call.1']
    #allocation4 [shape = 's32[1]{0}', space=sflag, size = 0x4, scoped, tag = 'scoped memory for tpu_custom_call.1']
    #allocation5 [shape = 'u8[32768]{0}', space=vmem, size = 0x8000, scoped, tag = 'input window, operand 9, single buffered']
    #allocation6 [shape = 's32[1]{0}', space=sflag, size = 0x4, scoped, tag = 'scoped memory for tpu_custom_call.1']
    #allocation7 [shape = 'u8[32768]{0}', space=vmem, size = 0x8000, scoped, tag = 'output window, operand 0, single buffered']
    %16 = vsyncpa [#allocation3], 0
    %17 = vsyncpa [#allocation6], 0
    %18 = vsyncpa [#allocation4], 0
    // Predicated region
    $region2: #{tpu_custom_call.1} parent=1 // pred_check
      _
    $region3: #{tpu_custom_call.1} parent=1 // pred_check_branch
      %20 = sbr.rel (0) target = $region5
    $region4: #{tpu_custom_call.1} parent=1 // pred_region
      _
    $region5: #{tpu_custom_call.1} parent=1 // pred_fallthru
      _
    // Predicated region
    $region6: #{tpu_custom_call.1} parent=1 // pred_check
      _
    $region7: #{tpu_custom_call.1} parent=1 // pred_check_branch
      %22 = sbr.rel (0) target = $region9
    $region8: #{tpu_custom_call.1} parent=1 // pred_region
      _
    $region9: #{tpu_custom_call.1} parent=1 // pred_fallthru
      _
    // Predicated region
    $region10: #{tpu_custom_call.1} parent=1 // pred_check
      _
    $region11: #{tpu_custom_call.1} parent=1 // pred_check_branch
      %24 = sbr.rel (0) target = $region13
    $region12: #{tpu_custom_call.1} parent=1 // pred_region
      _
    $region13: #{tpu_custom_call.1} parent=1 // pred_fallthru
      _
    // Predicated region
    $region14: #{tpu_custom_call.1} parent=1 // pred_check
      _
    $region15: #{tpu_custom_call.1} parent=1 // pred_check_branch
      %26 = sbr.rel (0) target = $region17
    $region16: #{tpu_custom_call.1} parent=1 // pred_region
      _
    $region17: #{tpu_custom_call.1} parent=1 // pred_fallthru
      _
    // Predicated region
    $region18: #{tpu_custom_call.1} parent=1 // pred_check
      _
    $region19: #{tpu_custom_call.1} parent=1 // pred_check_branch
      %28 = sbr.rel (0) target = $region21
    $region20: #{tpu_custom_call.1} parent=1 // pred_region
      _
    $region21: #{tpu_custom_call.1} parent=1 // pred_fallthru
      _
    // Predicated region
    $region22: #{tpu_custom_call.1} parent=1 // pred_check
      _
    $region23: #{tpu_custom_call.1} parent=1 // pred_check_branch
      %30 = sbr.rel (0) target = $region25
    $region24: #{tpu_custom_call.1} parent=1 // pred_region
      _
    $region25: #{tpu_custom_call.1} parent=1 // pred_fallthru
      _
    // Predicated region
    $region26: #{tpu_custom_call.1} parent=1 // pred_check
      _
    $region27: #{tpu_custom_call.1} parent=1 // pred_check_branch
      %32 = sbr.rel (0) target = $region29
    $region28: #{tpu_custom_call.1} parent=1 // pred_region
      _
    $region29: #{tpu_custom_call.1} parent=1 // pred_fallthru
      _
    // Predicated region
    $region30: #{tpu_custom_call.1} parent=1 // pred_check
      _
    $region31: #{tpu_custom_call.1} parent=1 // pred_check_branch
      %34 = sbr.rel (0) target = $region33
    $region32: #{tpu_custom_call.1} parent=1 // pred_region
      %s36 = ssub.s32 1024, 1024
      %37 = vsyncadd [#allocation3], %s36
      %s38 = sshll.u32 [#allocation2], 4
      %s39 = int_to_ptr.vmem [resolvable:$true] %s38
      %44 = dma.hbm_to_vmem [thread:$0]  %s7, 1024, %s39, [#allocation3], 64, 64, 4
    $region33: #{tpu_custom_call.1} parent=1 // pred_fallthru
      _
    // Predicated region
    $region34: #{tpu_custom_call.1} parent=1 // pred_check
      _
    $region35: #{tpu_custom_call.1} parent=1 // pred_check_branch
      %46 = sbr.rel (0) target = $region37
    $region36: #{tpu_custom_call.1} parent=1 // pred_region
      _
    $region37: #{tpu_custom_call.1} parent=1 // pred_fallthru
      _
    // Predicated region
    $region38: #{tpu_custom_call.1} parent=1 // pred_check
      _
    $region39: #{tpu_custom_call.1} parent=1 // pred_check_branch
      %48 = sbr.rel (0) target = $region41
    $region40: #{tpu_custom_call.1} parent=1 // pred_region
      %s50 = ssub.s32 1024, 1024
      %51 = vsyncadd [#allocation6], %s50
      %s52 = sshll.u32 [#allocation5], 4
      %s53 = int_to_ptr.vmem [resolvable:$true] %s52
      %58 = dma.hbm_to_vmem [thread:$0]  %s9, 1024, %s53, [#allocation6], 64, 64, 4
    $region41: #{tpu_custom_call.1} parent=1 // pred_fallthru
      _
    // Predicated region
    $region42: #{tpu_custom_call.1} parent=1 // pred_check
      _
    $region43: #{tpu_custom_call.1} parent=1 // pred_check_branch
      %60 = sbr.rel (0) target = $region45
    $region44: #{tpu_custom_call.1} parent=1 // pred_region
      _
    $region45: #{tpu_custom_call.1} parent=1 // pred_fallthru
      _
    // Predicated region
    $region46: #{tpu_custom_call.1} parent=1 // pred_check
      _
    $region47: #{tpu_custom_call.1} parent=1 // pred_check_branch
      %62 = sbr.rel (0) target = $region49
    $region48: #{tpu_custom_call.1} parent=1 // pred_region
      %63 = dma.done [#allocation3], 1024
    $region49: #{tpu_custom_call.1} parent=1 // pred_fallthru
      _
    // Predicated region
    $region50: #{tpu_custom_call.1} parent=1 // pred_check
      _
    $region51: #{tpu_custom_call.1} parent=1 // pred_check_branch
      %65 = sbr.rel (0) target = $region53
    $region52: #{tpu_custom_call.1} parent=1 // pred_region
      %66 = dma.done [#allocation6], 1024
    $region53: #{tpu_custom_call.1} parent=1 // pred_fallthru
      _
    %v68 = vld [vmem:[%s0] sm:$0xff]
    %v69 = vld [vmem:[%s0 + $0x8] sm:$0xff]
    %v70 = vld [vmem:[%s0 + $0x10] sm:$0xff]
    %v71 = vld [vmem:[%s0 + $0x18] sm:$0xff]
    %v72 = vld [vmem:[%s0 + $0x20] sm:$0xff]
    %v73 = vld [vmem:[%s0 + $0x28] sm:$0xff]
    %v74 = vld [vmem:[%s0 + $0x30] sm:$0xff]
    %v75 = vld [vmem:[%s0 + $0x38] sm:$0xff]
    %v76 = vld [vmem:[%s1] sm:$0x1]
    %v77 = vld [vmem:[%s2] sm:$0x1]
    %78 = vadd.xlane.f32.xlu0 %v68
    %v79 = vpop.xlane.xlu0 %78
    %80 = vadd.xlane.f32.xlu0 %v69
    %v81 = vpop.xlane.xlu0 %80
    %82 = vadd.xlane.f32.xlu0 %v70
    %v83 = vpop.xlane.xlu0 %82
    %84 = vadd.xlane.f32.xlu0 %v71
    %v85 = vpop.xlane.xlu0 %84
    %86 = vadd.xlane.f32.xlu0 %v72
    %v87 = vpop.xlane.xlu0 %86
    %88 = vadd.xlane.f32.xlu0 %v73
    %v89 = vpop.xlane.xlu0 %88
    %90 = vadd.xlane.f32.xlu0 %v74
    %v91 = vpop.xlane.xlu0 %90
    %92 = vadd.xlane.f32.xlu0 %v75
    %v93 = vpop.xlane.xlu0 %92
    %v94 = vrcp.pop 128.0
    %v95 = vmul.f32 %v79, %v94
    %v96 = vmul.f32 %v81, %v94
    %v97 = vmul.f32 %v83, %v94
    %v98 = vmul.f32 %v85, %v94
    %v99 = vmul.f32 %v87, %v94
    %v100 = vmul.f32 %v89, %v94
    %v101 = vmul.f32 %v91, %v94
    %v102 = vmul.f32 %v93, %v94
    %v103 = vmul.f32 %v68, %v68
    %v104 = vmul.f32 %v69, %v69
    %v105 = vmul.f32 %v70, %v70
    %v106 = vmul.f32 %v71, %v71
    %v107 = vmul.f32 %v72, %v72
    %v108 = vmul.f32 %v73, %v73
    %v109 = vmul.f32 %v74, %v74
    %v110 = vmul.f32 %v75, %v75
    %111 = vadd.xlane.f32.xlu0 %v103
    %v112 = vpop.xlane.xlu0 %111
    %113 = vadd.xlane.f32.xlu0 %v104
    %v114 = vpop.xlane.xlu0 %113
    %115 = vadd.xlane.f32.xlu0 %v105
    %v116 = vpop.xlane.xlu0 %115
    %117 = vadd.xlane.f32.xlu0 %v106
    %v118 = vpop.xlane.xlu0 %117
    %119 = vadd.xlane.f32.xlu0 %v107
    %v120 = vpop.xlane.xlu0 %119
    %121 = vadd.xlane.f32.xlu0 %v108
    %v122 = vpop.xlane.xlu0 %121
    %123 = vadd.xlane.f32.xlu0 %v109
    %v124 = vpop.xlane.xlu0 %123
    %125 = vadd.xlane.f32.xlu0 %v110
    %v126 = vpop.xlane.xlu0 %125
    %v127 = vmul.f32 %v112, %v94
    %v128 = vmul.f32 %v114, %v94
    %v129 = vmul.f32 %v116, %v94
    %v130 = vmul.f32 %v118, %v94
    %v131 = vmul.f32 %v120, %v94
    %v132 = vmul.f32 %v122, %v94
    %v133 = vmul.f32 %v124, %v94
    %v134 = vmul.f32 %v126, %v94
    %v135 = vmul.f32 %v95, %v95
    %v136 = vmul.f32 %v96, %v96
    %v137 = vmul.f32 %v97, %v97
    %v138 = vmul.f32 %v98, %v98
    %v139 = vmul.f32 %v99, %v99
    %v140 = vmul.f32 %v100, %v100
    %v141 = vmul.f32 %v101, %v101
    %v142 = vmul.f32 %v102, %v102
    %v143 = vsub.f32 %v127, %v135
    %v144 = vsub.f32 %v128, %v136
    %v145 = vsub.f32 %v129, %v137
    %v146 = vsub.f32 %v130, %v138
    %v147 = vsub.f32 %v131, %v139
    %v148 = vsub.f32 %v132, %v140
    %v149 = vsub.f32 %v133, %v141
    %v150 = vsub.f32 %v134, %v142
    %v151 = vmax.f32 %v143, 0.0
    %v152 = vmax.f32 %v144, 0.0
    %v153 = vmax.f32 %v145, 0.0
    %v154 = vmax.f32 %v146, 0.0
    %v155 = vmax.f32 %v147, 0.0
    %v156 = vmax.f32 %v148, 0.0
    %v157 = vmax.f32 %v149, 0.0
    %v158 = vmax.f32 %v150, 0.0
    %v159 = vsub.f32 %v68, %v95
    %v160 = vsub.f32 %v69, %v96
    %v161 = vsub.f32 %v70, %v97
    %v162 = vsub.f32 %v71, %v98
    %v163 = vsub.f32 %v72, %v99
    %v164 = vsub.f32 %v73, %v100
    %v165 = vsub.f32 %v74, %v101
    %v166 = vsub.f32 %v75, %v102
    %v167 = vadd.f32 %v151, 1e-05
    %v168 = vadd.f32 %v152, 1e-05
    %v169 = vadd.f32 %v153, 1e-05
    %v170 = vadd.f32 %v154, 1e-05
    %v171 = vadd.f32 %v155, 1e-05
    %v172 = vadd.f32 %v156, 1e-05
    %v173 = vadd.f32 %v157, 1e-05
    %v174 = vadd.f32 %v158, 1e-05
    %v175 = vrsqrt.pop %v167
    %v176 = vrsqrt.pop %v168
    %v177 = vrsqrt.pop %v169
    %v178 = vrsqrt.pop %v170
    %v179 = vrsqrt.pop %v171
    %v180 = vrsqrt.pop %v172
    %v181 = vrsqrt.pop %v173
    %v182 = vrsqrt.pop %v174
    %v183 = vmul.f32 %v159, %v175
    %v184 = vmul.f32 %v160, %v176
    %v185 = vmul.f32 %v161, %v177
    %v186 = vmul.f32 %v162, %v178
    %v187 = vmul.f32 %v163, %v179
    %v188 = vmul.f32 %v164, %v180
    %v189 = vmul.f32 %v165, %v181
    %v190 = vmul.f32 %v166, %v182
    %v192 = vlaneseq
    %v193 = vshrl.u32 %v192, 7
    %v194 = vsub.s32 0, %v193
    %v195 = vrot.slane %v76, %v194
    %v197 = vmul.f32 %v183, %v195
    %v198 = vmul.f32 %v184, %v195
    %v199 = vmul.f32 %v185, %v195
    %v200 = vmul.f32 %v186, %v195
    %v201 = vmul.f32 %v187, %v195
    %v202 = vmul.f32 %v188, %v195
    %v203 = vmul.f32 %v189, %v195
    %v204 = vmul.f32 %v190, %v195
    %v206 = vlaneseq
    %v207 = vshrl.u32 %v206, 7
    %v208 = vsub.s32 0, %v207
    %v209 = vrot.slane %v77, %v208
    %v211 = vadd.f32 %v197, %v209
    %v212 = vadd.f32 %v198, %v209
    %v213 = vadd.f32 %v199, %v209
    %v214 = vadd.f32 %v200, %v209
    %v215 = vadd.f32 %v201, %v209
    %v216 = vadd.f32 %v202, %v209
    %v217 = vadd.f32 %v203, %v209
    %v218 = vadd.f32 %v204, %v209
    %v219 = vpack.c.bf16 %v212, %v211
    %v220 = vpack.c.bf16 %v214, %v213
    %v221 = vpack.c.bf16 %v216, %v215
    %v222 = vpack.c.bf16 %v218, %v217
    %v223 = vld [vmem:[%s3] sm:$0xf]
    %v224 = vld [vmem:[%s3 + $0x4] sm:$0xf]
    %v225 = vld [vmem:[%s3 + $0x8] sm:$0xf]
    %v226 = vld [vmem:[%s3 + $0xc] sm:$0xf]
    %v227 = vld [vmem:[%s4] sm:$0xff]
    %v228 = vld [vmem:[%s4 + $0x8] sm:$0xff]
    %v229 = vld [vmem:[%s4 + $0x10] sm:$0xff]
    %v230 = vld [vmem:[%s4 + $0x18] sm:$0xff]
    %232 = vset.pattern.permute.xlu0 0
    %233 = vperm.xlu0 %232, %v227
    %v234 = vpop.permute.xlu0 %233
    %237 = vset.pattern.permute.xlu0 0
    %238 = vperm.xlu0 %237, %v228
    %v239 = vpop.permute.xlu0 %238
    %242 = vset.pattern.permute.xlu0 0
    %243 = vperm.xlu0 %242, %v229
    %v244 = vpop.permute.xlu0 %243
    %247 = vset.pattern.permute.xlu0 0
    %248 = vperm.xlu0 %247, %v230
    %v249 = vpop.permute.xlu0 %248
    %v255 = vunpack.c.l.b16 %v223
    %v256 = vunpack.c.l.b16 %v224
    %v257 = vunpack.c.l.b16 %v225
    %v258 = vunpack.c.l.b16 %v226
    %v259 = vpack.c.b16 %v256, %v255
    %v260 = vpack.c.b16 %v258, %v257
    %vm261 = vcmask 130048
    %v263 = vsel %vm261, %v259, 0
    %v266 = vsel %vm261, %v260, 0
    %268 = vmatprep.subr.bf16.mxu0 %v220
    %269 = vmatpush1.bf16.msra.mxu0 %v219
    %270 = vmatprep.subr.bf16.mxu0 0
    %271 = vmatpush1.bf16.msra.mxu0 0
    %272 = vmatprep.subr.bf16.mxu0 0
    %273 = vmatpush1.bf16.msra.mxu0 0
    %274 = vmatprep.subr.bf16.mxu0 0
    %275 = vmatpush1.bf16.msra.mxu0 0
    %276 = vmatprep.subr.bf16.mxu0 0
    %277 = vmatpush1.bf16.msra.mxu0 0
    %278 = vmatprep.subr.bf16.mxu0 0
    %279 = vmatpush1.bf16.msra.mxu0 0
    %280 = vmatprep.subr.bf16.mxu0 0
    %281 = vmatpush1.bf16.msra.mxu0 0
    %282 = vmatprep.subr.bf16.mxu0 0
    %283 = vmatpush1.bf16.msra.mxu0 0
    %284 = vmatprep.subr.bf16.mxu0 0
    %285 = vmatpush1.bf16.msra.mxu0 0
    %286 = vmatprep.subr.bf16.mxu0 0
    %287 = vmatpush1.bf16.msra.mxu0 0
    %288 = vmatprep.subr.bf16.mxu0 0
    %289 = vmatpush1.bf16.msra.mxu0 0
    %290 = vmatprep.subr.bf16.mxu0 0
    %291 = vmatpush1.bf16.msra.mxu0 0
    %292 = vmatprep.subr.bf16.mxu0 0
    %293 = vmatpush1.bf16.msra.mxu0 0
    %294 = vmatprep.subr.bf16.mxu0 0
    %295 = vmatpush1.bf16.msra.mxu0 0
    %296 = vmatprep.subr.bf16.mxu0 0
    %297 = vmatpush1.bf16.msra.mxu0 0
    %298 = vmatprep.subr.bf16.mxu0 0
    %299 = vmatpush1.bf16.msra.mxu0 0
    %300 = vmatprep.mubr.bf16.mxu0 0
    %301 = vmatmul.mubr.bf16.gmra.mrb[0].mxu0 %v263
    %v302 = vpop.f32.mrb[0].mxu0
    %v303 = vadd.f32 %v234, %v302
    %v304 = vpop.f32.mrb[0].mxu0
    %v305 = vadd.f32 %v234, %v304
    %v306 = vpop.f32.mrb[0].mxu0
    %v307 = vadd.f32 %v239, %v306
    %v308 = vpop.f32.mrb[0].mxu0
    %v309 = vadd.f32 %v239, %v308
    %310 = vmatprep.mubr.bf16.mxu0 0
    %311 = vmatmul.mubr.bf16.gmra.mrb[0].mxu0 %v266
    %v312 = vpop.f32.mrb[0].mxu0
    %v313 = vadd.f32 %v244, %v312
    %v314 = vpop.f32.mrb[0].mxu0
    %v315 = vadd.f32 %v244, %v314
    %v316 = vpop.f32.mrb[0].mxu0
    %v317 = vadd.f32 %v249, %v316
    %v318 = vpop.f32.mrb[0].mxu0
    %v319 = vadd.f32 %v249, %v318
    %320 = vdwg.mxu0
    %321 = vmatprep.subr.bf16.mxu0 %v222
    %322 = vmatpush1.bf16.msra.mxu0 %v221
    %323 = vmatprep.subr.bf16.mxu0 0
    %324 = vmatpush1.bf16.msra.mxu0 0
    %325 = vmatprep.subr.bf16.mxu0 0
    %326 = vmatpush1.bf16.msra.mxu0 0
    %327 = vmatprep.subr.bf16.mxu0 0
    %328 = vmatpush1.bf16.msra.mxu0 0
    %329 = vmatprep.subr.bf16.mxu0 0
    %330 = vmatpush1.bf16.msra.mxu0 0
    %331 = vmatprep.subr.bf16.mxu0 0
    %332 = vmatpush1.bf16.msra.mxu0 0
    %333 = vmatprep.subr.bf16.mxu0 0
    %334 = vmatpush1.bf16.msra.mxu0 0
    %335 = vmatprep.subr.bf16.mxu0 0
    %336 = vmatpush1.bf16.msra.mxu0 0
    %337 = vmatprep.subr.bf16.mxu0 0
    %338 = vmatpush1.bf16.msra.mxu0 0
    %339 = vmatprep.subr.bf16.mxu0 0
    %340 = vmatpush1.bf16.msra.mxu0 0
    %341 = vmatprep.subr.bf16.mxu0 0
    %342 = vmatpush1.bf16.msra.mxu0 0
    %343 = vmatprep.subr.bf16.mxu0 0
    %344 = vmatpush1.bf16.msra.mxu0 0
    %345 = vmatprep.subr.bf16.mxu0 0
    %346 = vmatpush1.bf16.msra.mxu0 0
    %347 = vmatprep.subr.bf16.mxu0 0
    %348 = vmatpush1.bf16.msra.mxu0 0
    %349 = vmatprep.subr.bf16.mxu0 0
    %350 = vmatpush1.bf16.msra.mxu0 0
    %351 = vmatprep.subr.bf16.mxu0 0
    %352 = vmatpush1.bf16.msra.mxu0 0
    %353 = vmatprep.mubr.bf16.mxu0 0
    %354 = vmatmul.mubr.bf16.gmra.mrb[0].mxu0 %v263
    %v355 = vpop.f32.mrb[0].mxu0
    %v356 = vadd.f32 %v234, %v355
    %v357 = vpop.f32.mrb[0].mxu0
    %v358 = vadd.f32 %v234, %v357
    %v359 = vpop.f32.mrb[0].mxu0
    %v360 = vadd.f32 %v239, %v359
    %v361 = vpop.f32.mrb[0].mxu0
    %v362 = vadd.f32 %v239, %v361
    %363 = vmatprep.mubr.bf16.mxu0 0
    %364 = vmatmul.mubr.bf16.gmra.mrb[0].mxu0 %v266
    %v365 = vpop.f32.mrb[0].mxu0
    %v366 = vadd.f32 %v244, %v365
    %v367 = vpop.f32.mrb[0].mxu0
    %v368 = vadd.f32 %v244, %v367
    %v369 = vpop.f32.mrb[0].mxu0
    %v370 = vadd.f32 %v249, %v369
    %v371 = vpop.f32.mrb[0].mxu0
    %v372 = vadd.f32 %v249, %v371
    %373 = vdwg.mxu0
    %v374 = vmul.f32 %v303, 0.5
    %v375 = vmul.f32 %v305, 0.5
    %v376 = vmul.f32 %v356, 0.5
    %v377 = vmul.f32 %v358, 0.5
    %v378 = vmul.f32 %v307, 0.5
    %v379 = vmul.f32 %v309, 0.5
    %v380 = vmul.f32 %v360, 0.5
    %v381 = vmul.f32 %v362, 0.5
    %v382 = vmul.f32 %v313, 0.5
    %v383 = vmul.f32 %v315, 0.5
    %v384 = vmul.f32 %v366, 0.5
    %v385 = vmul.f32 %v368, 0.5
    %v386 = vmul.f32 %v317, 0.5
    %v387 = vmul.f32 %v319, 0.5
    %v388 = vmul.f32 %v370, 0.5
    %v389 = vmul.f32 %v372, 0.5
    %v390 = vmul.f32 %v303, 0.70710677
    %v391 = vmul.f32 %v305, 0.70710677
    %v392 = vmul.f32 %v356, 0.70710677
    %v393 = vmul.f32 %v358, 0.70710677
    %v394 = vmul.f32 %v307, 0.70710677
    %v395 = vmul.f32 %v309, 0.70710677
    %v396 = vmul.f32 %v360, 0.70710677
    %v397 = vmul.f32 %v362, 0.70710677
    %v398 = vmul.f32 %v313, 0.70710677
    %v399 = vmul.f32 %v315, 0.70710677
    %v400 = vmul.f32 %v366, 0.70710677
    %v401 = vmul.f32 %v368, 0.70710677
    %v402 = vmul.f32 %v317, 0.70710677
    %v403 = vmul.f32 %v319, 0.70710677
    %v404 = vmul.f32 %v370, 0.70710677
    %v405 = vmul.f32 %v372, 0.70710677
    %v406 = verf.f32.pop %v390
    %v407 = verf.f32.pop %v391
    %v408 = verf.f32.pop %v392
    %v409 = verf.f32.pop %v393
    %v410 = verf.f32.pop %v394
    %v411 = verf.f32.pop %v395
    %v412 = verf.f32.pop %v396
    %v413 = verf.f32.pop %v397
    %v414 = verf.f32.pop %v398
    %v415 = verf.f32.pop %v399
    %v416 = verf.f32.pop %v400
    %v417 = verf.f32.pop %v401
    %v418 = verf.f32.pop %v402
    %v419 = verf.f32.pop %v403
    %v420 = verf.f32.pop %v404
    %v421 = verf.f32.pop %v405
    %v422 = vadd.f32 %v406, 1.0
    %v423 = vadd.f32 %v407, 1.0
    %v424 = vadd.f32 %v408, 1.0
    %v425 = vadd.f32 %v409, 1.0
    %v426 = vadd.f32 %v410, 1.0
    %v427 = vadd.f32 %v411, 1.0
    %v428 = vadd.f32 %v412, 1.0
    %v429 = vadd.f32 %v413, 1.0
    %v430 = vadd.f32 %v414, 1.0
    %v431 = vadd.f32 %v415, 1.0
    %v432 = vadd.f32 %v416, 1.0
    %v433 = vadd.f32 %v417, 1.0
    %v434 = vadd.f32 %v418, 1.0
    %v435 = vadd.f32 %v419, 1.0
    %v436 = vadd.f32 %v420, 1.0
    %v437 = vadd.f32 %v421, 1.0
    %v438 = vmul.f32 %v374, %v422
    %v439 = vmul.f32 %v375, %v423
    %v440 = vmul.f32 %v376, %v424
    %v441 = vmul.f32 %v377, %v425
    %v442 = vmul.f32 %v378, %v426
    %v443 = vmul.f32 %v379, %v427
    %v444 = vmul.f32 %v380, %v428
    %v445 = vmul.f32 %v381, %v429
    %v446 = vmul.f32 %v382, %v430
    %v447 = vmul.f32 %v383, %v431
    %v448 = vmul.f32 %v384, %v432
    %v449 = vmul.f32 %v385, %v433
    %v450 = vmul.f32 %v386, %v434
    %v451 = vmul.f32 %v387, %v435
    %v452 = vmul.f32 %v388, %v436
    %v453 = vmul.f32 %v389, %v437
    %v454 = vpack.c.bf16 %v442, %v438
    %v455 = vpack.c.bf16 %v443, %v439
    %v456 = vpack.c.bf16 %v444, %v440
    %v457 = vpack.c.bf16 %v445, %v441
    %v458 = vpack.c.bf16 %v450, %v446
    %v459 = vpack.c.bf16 %v451, %v447
    %v460 = vpack.c.bf16 %v452, %v448
    %v461 = vpack.c.bf16 %v453, %v449
    %v462 = vld [vmem:[%s5] sm:$0xf]
    %v463 = vld [vmem:[%s5 + $0x4] sm:$0xf]
    %v464 = vld [vmem:[%s6] sm:$0xff]
    %v465 = vld [vmem:[%s6 + $0x8] sm:$0xff]
    %467 = vset.pattern.permute.xlu0 0
    %468 = vperm.xlu0 %467, %v464
    %v469 = vpop.permute.xlu0 %468
    %472 = vset.pattern.permute.xlu0 0
    %473 = vperm.xlu0 %472, %v465
    %v474 = vpop.permute.xlu0 %473
    %v478 = vunpack.c.l.b16 %v462
    %v479 = vunpack.c.l.b16 %v463
    %v480 = vpack.c.b16 %v479, %v478
    %vm481 = vcmask 261120
    %v483 = vsel %vm481, %v480, 0
    %485 = vmatprep.subr.bf16.mxu0 %v455
    %486 = vmatpush1.bf16.msra.mxu0 %v454
    %487 = vmatprep.subr.bf16.mxu0 %v459
    %488 = vmatpush1.bf16.msra.mxu0 %v458
    %489 = vmatprep.subr.bf16.mxu0 0
    %490 = vmatpush1.bf16.msra.mxu0 0
    %491 = vmatprep.subr.bf16.mxu0 0
    %492 = vmatpush1.bf16.msra.mxu0 0
    %493 = vmatprep.subr.bf16.mxu0 0
    %494 = vmatpush1.bf16.msra.mxu0 0
    %495 = vmatprep.subr.bf16.mxu0 0
    %496 = vmatpush1.bf16.msra.mxu0 0
    %497 = vmatprep.subr.bf16.mxu0 0
    %498 = vmatpush1.bf16.msra.mxu0 0
    %499 = vmatprep.subr.bf16.mxu0 0
    %500 = vmatpush1.bf16.msra.mxu0 0
    %501 = vmatprep.subr.bf16.mxu0 0
    %502 = vmatpush1.bf16.msra.mxu0 0
    %503 = vmatprep.subr.bf16.mxu0 0
    %504 = vmatpush1.bf16.msra.mxu0 0
    %505 = vmatprep.subr.bf16.mxu0 0
    %506 = vmatpush1.bf16.msra.mxu0 0
    %507 = vmatprep.subr.bf16.mxu0 0
    %508 = vmatpush1.bf16.msra.mxu0 0
    %509 = vmatprep.subr.bf16.mxu0 0
    %510 = vmatpush1.bf16.msra.mxu0 0
    %511 = vmatprep.subr.bf16.mxu0 0
    %512 = vmatpush1.bf16.msra.mxu0 0
    %513 = vmatprep.subr.bf16.mxu0 0
    %514 = vmatpush1.bf16.msra.mxu0 0
    %515 = vmatprep.subr.bf16.mxu0 0
    %516 = vmatpush1.bf16.msra.mxu0 0
    %517 = vmatprep.mubr.bf16.mxu0 0
    %518 = vmatmul.mubr.bf16.gmra.mrb[0].mxu0 %v483
    %v519 = vpop.f32.mrb[0].mxu0
    %v520 = vadd.f32 %v469, %v519
    %v521 = vpop.f32.mrb[0].mxu0
    %v522 = vadd.f32 %v469, %v521
    %v523 = vpop.f32.mrb[0].mxu0
    %v524 = vadd.f32 %v474, %v523
    %v525 = vpop.f32.mrb[0].mxu0
    %v526 = vadd.f32 %v474, %v525
    %527 = vdwg.mxu0
    %528 = vmatprep.subr.bf16.mxu0 %v457
    %529 = vmatpush1.bf16.msra.mxu0 %v456
    %530 = vmatprep.subr.bf16.mxu0 %v461
    %531 = vmatpush1.bf16.msra.mxu0 %v460
    %532 = vmatprep.subr.bf16.mxu0 0
    %533 = vmatpush1.bf16.msra.mxu0 0
    %534 = vmatprep.subr.bf16.mxu0 0
    %535 = vmatpush1.bf16.msra.mxu0 0
    %536 = vmatprep.subr.bf16.mxu0 0
    %537 = vmatpush1.bf16.msra.mxu0 0
    %538 = vmatprep.subr.bf16.mxu0 0
    %539 = vmatpush1.bf16.msra.mxu0 0
    %540 = vmatprep.subr.bf16.mxu0 0
    %541 = vmatpush1.bf16.msra.mxu0 0
    %542 = vmatprep.subr.bf16.mxu0 0
    %543 = vmatpush1.bf16.msra.mxu0 0
    %544 = vmatprep.subr.bf16.mxu0 0
    %545 = vmatpush1.bf16.msra.mxu0 0
    %546 = vmatprep.subr.bf16.mxu0 0
    %547 = vmatpush1.bf16.msra.mxu0 0
    %548 = vmatprep.subr.bf16.mxu0 0
    %549 = vmatpush1.bf16.msra.mxu0 0
    %550 = vmatprep.subr.bf16.mxu0 0
    %551 = vmatpush1.bf16.msra.mxu0 0
    %552 = vmatprep.subr.bf16.mxu0 0
    %553 = vmatpush1.bf16.msra.mxu0 0
    %554 = vmatprep.subr.bf16.mxu0 0
    %555 = vmatpush1.bf16.msra.mxu0 0
    %556 = vmatprep.subr.bf16.mxu0 0
    %557 = vmatpush1.bf16.msra.mxu0 0
    %558 = vmatprep.subr.bf16.mxu0 0
    %559 = vmatpush1.bf16.msra.mxu0 0
    %560 = vmatprep.mubr.bf16.mxu0 0
    %561 = vmatmul.mubr.bf16.gmra.mrb[0].mxu0 %v483
    %v562 = vpop.f32.mrb[0].mxu0
    %v563 = vadd.f32 %v469, %v562
    %v564 = vpop.f32.mrb[0].mxu0
    %v565 = vadd.f32 %v469, %v564
    %v566 = vpop.f32.mrb[0].mxu0
    %v567 = vadd.f32 %v474, %v566
    %v568 = vpop.f32.mrb[0].mxu0
    %v569 = vadd.f32 %v474, %v568
    %570 = vdwg.mxu0
    %v571 = vadd.f32 %v68, %v520
    %v572 = vadd.f32 %v69, %v524
    %v573 = vadd.f32 %v70, %v522
    %v574 = vadd.f32 %v71, %v526
    %v575 = vadd.f32 %v72, %v563
    %v576 = vadd.f32 %v73, %v567
    %v577 = vadd.f32 %v74, %v565
    %v578 = vadd.f32 %v75, %v569
    %579 = vadd.xlane.f32.xlu0 %v571
    %v580 = vpop.xlane.xlu0 %579
    %581 = vadd.xlane.f32.xlu0 %v572
    %v582 = vpop.xlane.xlu0 %581
    %583 = vadd.xlane.f32.xlu0 %v573
    %v584 = vpop.xlane.xlu0 %583
    %585 = vadd.xlane.f32.xlu0 %v574
    %v586 = vpop.xlane.xlu0 %585
    %587 = vadd.xlane.f32.xlu0 %v575
    %v588 = vpop.xlane.xlu0 %587
    %589 = vadd.xlane.f32.xlu0 %v576
    %v590 = vpop.xlane.xlu0 %589
    %591 = vadd.xlane.f32.xlu0 %v577
    %v592 = vpop.xlane.xlu0 %591
    %593 = vadd.xlane.f32.xlu0 %v578
    %v594 = vpop.xlane.xlu0 %593
    %v595 = vmul.f32 %v580, %v94
    %v596 = vmul.f32 %v582, %v94
    %v597 = vmul.f32 %v584, %v94
    %v598 = vmul.f32 %v586, %v94
    %v599 = vmul.f32 %v588, %v94
    %v600 = vmul.f32 %v590, %v94
    %v601 = vmul.f32 %v592, %v94
    %v602 = vmul.f32 %v594, %v94
    %v603 = vmul.f32 %v571, %v571
    %v604 = vmul.f32 %v572, %v572
    %v605 = vmul.f32 %v573, %v573
    %v606 = vmul.f32 %v574, %v574
    %v607 = vmul.f32 %v575, %v575
    %v608 = vmul.f32 %v576, %v576
    %v609 = vmul.f32 %v577, %v577
    %v610 = vmul.f32 %v578, %v578
    %611 = vadd.xlane.f32.xlu0 %v603
    %v612 = vpop.xlane.xlu0 %611
    %613 = vadd.xlane.f32.xlu0 %v604
    %v614 = vpop.xlane.xlu0 %613
    %615 = vadd.xlane.f32.xlu0 %v605
    %v616 = vpop.xlane.xlu0 %615
    %617 = vadd.xlane.f32.xlu0 %v606
    %v618 = vpop.xlane.xlu0 %617
    %619 = vadd.xlane.f32.xlu0 %v607
    %v620 = vpop.xlane.xlu0 %619
    %621 = vadd.xlane.f32.xlu0 %v608
    %v622 = vpop.xlane.xlu0 %621
    %623 = vadd.xlane.f32.xlu0 %v609
    %v624 = vpop.xlane.xlu0 %623
    %625 = vadd.xlane.f32.xlu0 %v610
    %v626 = vpop.xlane.xlu0 %625
    %v627 = vmul.f32 %v612, %v94
    %v628 = vmul.f32 %v614, %v94
    %v629 = vmul.f32 %v616, %v94
    %v630 = vmul.f32 %v618, %v94
    %v631 = vmul.f32 %v620, %v94
    %v632 = vmul.f32 %v622, %v94
    %v633 = vmul.f32 %v624, %v94
    %v634 = vmul.f32 %v626, %v94
    %v635 = vmul.f32 %v595, %v595
    %v636 = vmul.f32 %v596, %v596
    %v637 = vmul.f32 %v597, %v597
    %v638 = vmul.f32 %v598, %v598
    %v639 = vmul.f32 %v599, %v599
    %v640 = vmul.f32 %v600, %v600
    %v641 = vmul.f32 %v601, %v601
    %v642 = vmul.f32 %v602, %v602
    %v643 = vsub.f32 %v627, %v635
    %v644 = vsub.f32 %v628, %v636
    %v645 = vsub.f32 %v629, %v637
    %v646 = vsub.f32 %v630, %v638
    %v647 = vsub.f32 %v631, %v639
    %v648 = vsub.f32 %v632, %v640
    %v649 = vsub.f32 %v633, %v641
    %v650 = vsub.f32 %v634, %v642
    %v651 = vmax.f32 %v643, 0.0
    %v652 = vmax.f32 %v644, 0.0
    %v653 = vmax.f32 %v645, 0.0
    %v654 = vmax.f32 %v646, 0.0
    %v655 = vmax.f32 %v647, 0.0
    %v656 = vmax.f32 %v648, 0.0
    %v657 = vmax.f32 %v649, 0.0
    %v658 = vmax.f32 %v650, 0.0
    %v659 = vsub.f32 %v571, %v595
    %v660 = vsub.f32 %v572, %v596
    %v661 = vsub.f32 %v573, %v597
    %v662 = vsub.f32 %v574, %v598
    %v663 = vsub.f32 %v575, %v599
    %v664 = vsub.f32 %v576, %v600
    %v665 = vsub.f32 %v577, %v601
    %v666 = vsub.f32 %v578, %v602
    %v667 = vadd.f32 %v651, 1e-05
    %v668 = vadd.f32 %v652, 1e-05
    %v669 = vadd.f32 %v653, 1e-05
    %v670 = vadd.f32 %v654, 1e-05
    %v671 = vadd.f32 %v655, 1e-05
    %v672 = vadd.f32 %v656, 1e-05
    %v673 = vadd.f32 %v657, 1e-05
    %v674 = vadd.f32 %v658, 1e-05
    %v675 = vrsqrt.pop %v667
    %v676 = vrsqrt.pop %v668
    %v677 = vrsqrt.pop %v669
    %v678 = vrsqrt.pop %v670
    %v679 = vrsqrt.pop %v671
    %v680 = vrsqrt.pop %v672
    %v681 = vrsqrt.pop %v673
    %v682 = vrsqrt.pop %v674
    %v683 = vmul.f32 %v659, %v675
    %v684 = vmul.f32 %v660, %v676
    %v685 = vmul.f32 %v661, %v677
    %v686 = vmul.f32 %v662, %v678
    %v687 = vmul.f32 %v663, %v679
    %v688 = vmul.f32 %v664, %v680
    %v689 = vmul.f32 %v665, %v681
    %v690 = vmul.f32 %v666, %v682
    %v691 = vmul.f32 %v683, %v195
    %v692 = vmul.f32 %v684, %v195
    %v693 = vmul.f32 %v685, %v195
    %v694 = vmul.f32 %v686, %v195
    %v695 = vmul.f32 %v687, %v195
    %v696 = vmul.f32 %v688, %v195
    %v697 = vmul.f32 %v689, %v195
    %v698 = vmul.f32 %v690, %v195
    %v699 = vadd.f32 %v691, %v209
    %v700 = vadd.f32 %v692, %v209
    %v701 = vadd.f32 %v693, %v209
    %v702 = vadd.f32 %v694, %v209
    %v703 = vadd.f32 %v695, %v209
    %v704 = vadd.f32 %v696, %v209
    %v705 = vadd.f32 %v697, %v209
    %v706 = vadd.f32 %v698, %v209
    %v707 = vpack.c.bf16 %v700, %v699
    %v708 = vpack.c.bf16 %v702, %v701
    %v709 = vpack.c.bf16 %v704, %v703
    %v710 = vpack.c.bf16 %v706, %v705
    %v711 = vld [vmem:[#allocation2] sm:$0xf]
    %v712 = vld [vmem:[#allocation2 + $0x4] sm:$0xf]
    %v713 = vld [vmem:[#allocation2 + $0x8] sm:$0xf]
    %v714 = vld [vmem:[#allocation2 + $0xc] sm:$0xf]
    %v715 = vld [vmem:[#allocation2 + $0x10] sm:$0xf]
    %v716 = vld [vmem:[#allocation2 + $0x14] sm:$0xf]
    %v717 = vld [vmem:[#allocation2 + $0x18] sm:$0xf]
    %v718 = vld [vmem:[#allocation2 + $0x1c] sm:$0xf]
    %v719 = vld [vmem:[#allocation2 + $0x20] sm:$0xf]
    %v720 = vld [vmem:[#allocation2 + $0x24] sm:$0xf]
    %v721 = vld [vmem:[#allocation2 + $0x28] sm:$0xf]
    %v722 = vld [vmem:[#allocation2 + $0x2c] sm:$0xf]
    %v723 = vld [vmem:[#allocation2 + $0x30] sm:$0xf]
    %v724 = vld [vmem:[#allocation2 + $0x34] sm:$0xf]
    %v725 = vld [vmem:[#allocation2 + $0x38] sm:$0xf]
    %v726 = vld [vmem:[#allocation2 + $0x3c] sm:$0xf]
    %v727 = vld [vmem:[%s8] sm:$0x1]
    %v729 = vlaneseq
    %v730 = vshrl.u32 %v729, 7
    %v731 = vsub.s32 0, %v730
    %v732 = vrot.slane %v727, %v731
    %v750 = vunpack.c.l.b16 %v711
    %v751 = vunpack.c.l.b16 %v712
    %v752 = vunpack.c.l.b16 %v713
    %v753 = vunpack.c.l.b16 %v714
    %v754 = vunpack.c.l.b16 %v715
    %v755 = vunpack.c.l.b16 %v716
    %v756 = vunpack.c.l.b16 %v717
    %v757 = vunpack.c.l.b16 %v718
    %v758 = vunpack.c.l.b16 %v719
    %v759 = vunpack.c.l.b16 %v720
    %v760 = vunpack.c.l.b16 %v721
    %v761 = vunpack.c.l.b16 %v722
    %v762 = vunpack.c.l.b16 %v723
    %v763 = vunpack.c.l.b16 %v724
    %v764 = vunpack.c.l.b16 %v725
    %v765 = vunpack.c.l.b16 %v726
    %v766 = vpack.c.b16 %v751, %v750
    %v767 = vpack.c.b16 %v753, %v752
    %v768 = vpack.c.b16 %v755, %v754
    %v769 = vpack.c.b16 %v757, %v756
    %v770 = vpack.c.b16 %v759, %v758
    %v771 = vpack.c.b16 %v761, %v760
    %v772 = vpack.c.b16 %v763, %v762
    %v773 = vpack.c.b16 %v765, %v764
    %782 = vmatprep.subr.bf16.mxu0 0
    %783 = vmatpush1.bf16.msra.mxu0 %v766
    %784 = vmatprep.subr.bf16.mxu0 0
    %785 = vmatpush1.bf16.msra.mxu0 %v767
    %786 = vmatprep.subr.bf16.mxu0 0
    %787 = vmatpush1.bf16.msra.mxu0 %v768
    %788 = vmatprep.subr.bf16.mxu0 0
    %789 = vmatpush1.bf16.msra.mxu0 %v769
    %790 = vmatprep.subr.bf16.mxu0 0
    %791 = vmatpush1.bf16.msra.mxu0 %v770
    %792 = vmatprep.subr.bf16.mxu0 0
    %793 = vmatpush1.bf16.msra.mxu0 %v771
    %794 = vmatprep.subr.bf16.mxu0 0
    %795 = vmatpush1.bf16.msra.mxu0 %v772
    %796 = vmatprep.subr.bf16.mxu0 0
    %797 = vmatpush1.bf16.msra.mxu0 %v773
    %798 = vmatprep.subr.bf16.mxu0 0
    %799 = vmatpush1.bf16.msra.mxu0 0
    %800 = vmatprep.subr.bf16.mxu0 0
    %801 = vmatpush1.bf16.msra.mxu0 0
    %802 = vmatprep.subr.bf16.mxu0 0
    %803 = vmatpush1.bf16.msra.mxu0 0
    %804 = vmatprep.subr.bf16.mxu0 0
    %805 = vmatpush1.bf16.msra.mxu0 0
    %806 = vmatprep.subr.bf16.mxu0 0
    %807 = vmatpush1.bf16.msra.mxu0 0
    %808 = vmatprep.subr.bf16.mxu0 0
    %809 = vmatpush1.bf16.msra.mxu0 0
    %810 = vmatprep.subr.bf16.mxu0 0
    %811 = vmatpush1.bf16.msra.mxu0 0
    %812 = vmatprep.subr.bf16.mxu0 0
    %813 = vmatpush1.bf16.msra.mxu0 0
    %814 = vmatprep.mubr.bf16.mxu0 0
    %815 = vmatmul.mubr.bf16.gmra.mrb[0].mxu0 %v707
    %v816 = vpop.f32.mrb[0].mxu0
    %v817 = vadd.f32 %v732, %v816
    %v818 = vpop.f32.mrb[0].mxu0
    %v819 = vpop.f32.mrb[0].mxu0
    %v820 = vadd.f32 %v732, %v819
    %v821 = vpop.f32.mrb[0].mxu0
    %822 = vmatprep.mubr.bf16.mxu0 0
    %823 = vmatmul.mubr.bf16.gmra.mrb[0].mxu0 %v708
    %v824 = vpop.f32.mrb[0].mxu0
    %v825 = vadd.f32 %v732, %v824
    %v826 = vpop.f32.mrb[0].mxu0
    %v827 = vpop.f32.mrb[0].mxu0
    %v828 = vadd.f32 %v732, %v827
    %v829 = vpop.f32.mrb[0].mxu0
    %830 = vmatprep.mubr.bf16.mxu0 0
    %831 = vmatmul.mubr.bf16.gmra.mrb[0].mxu0 %v709
    %v832 = vpop.f32.mrb[0].mxu0
    %v833 = vadd.f32 %v732, %v832
    %v834 = vpop.f32.mrb[0].mxu0
    %v835 = vpop.f32.mrb[0].mxu0
    %v836 = vadd.f32 %v732, %v835
    %v837 = vpop.f32.mrb[0].mxu0
    %838 = vmatprep.mubr.bf16.mxu0 0
    %839 = vmatmul.mubr.bf16.gmra.mrb[0].mxu0 %v710
    %v840 = vpop.f32.mrb[0].mxu0
    %v841 = vadd.f32 %v732, %v840
    %v842 = vpop.f32.mrb[0].mxu0
    %v843 = vpop.f32.mrb[0].mxu0
    %v844 = vadd.f32 %v732, %v843
    %v845 = vpop.f32.mrb[0].mxu0
    %846 = vdwg.mxu0
    %v847 = vmul.f32 %v817, 0.5
    %v848 = vmul.f32 %v820, 0.5
    %v849 = vmul.f32 %v825, 0.5
    %v850 = vmul.f32 %v828, 0.5
    %v851 = vmul.f32 %v833, 0.5
    %v852 = vmul.f32 %v836, 0.5
    %v853 = vmul.f32 %v841, 0.5
    %v854 = vmul.f32 %v844, 0.5
    %v855 = vmul.f32 %v817, 0.70710677
    %v856 = vmul.f32 %v820, 0.70710677
    %v857 = vmul.f32 %v825, 0.70710677
    %v858 = vmul.f32 %v828, 0.70710677
    %v859 = vmul.f32 %v833, 0.70710677
    %v860 = vmul.f32 %v836, 0.70710677
    %v861 = vmul.f32 %v841, 0.70710677
    %v862 = vmul.f32 %v844, 0.70710677
    %v863 = verf.f32.pop %v855
    %v864 = verf.f32.pop %v856
    %v865 = verf.f32.pop %v857
    %v866 = verf.f32.pop %v858
    %v867 = verf.f32.pop %v859
    %v868 = verf.f32.pop %v860
    %v869 = verf.f32.pop %v861
    %v870 = verf.f32.pop %v862
    %v871 = vadd.f32 %v863, 1.0
    %v872 = vadd.f32 %v864, 1.0
    %v873 = vadd.f32 %v865, 1.0
    %v874 = vadd.f32 %v866, 1.0
    %v875 = vadd.f32 %v867, 1.0
    %v876 = vadd.f32 %v868, 1.0
    %v877 = vadd.f32 %v869, 1.0
    %v878 = vadd.f32 %v870, 1.0
    %v879 = vmul.f32 %v847, %v871
    %v880 = vmul.f32 %v848, %v872
    %v881 = vmul.f32 %v849, %v873
    %v882 = vmul.f32 %v850, %v874
    %v883 = vmul.f32 %v851, %v875
    %v884 = vmul.f32 %v852, %v876
    %v885 = vmul.f32 %v853, %v877
    %v886 = vmul.f32 %v854, %v878
    %v887 = vpack.c.bf16 %v880, %v879
    %v888 = vpack.c.bf16 %v882, %v881
    %v889 = vpack.c.bf16 %v884, %v883
    %v890 = vpack.c.bf16 %v886, %v885
    %v891 = vld [vmem:[#allocation5] sm:$0xf]
    %v892 = vld [vmem:[#allocation5 + $0x4] sm:$0xf]
    %v893 = vld [vmem:[#allocation5 + $0x8] sm:$0xf]
    %v894 = vld [vmem:[#allocation5 + $0xc] sm:$0xf]
    %v895 = vld [vmem:[#allocation5 + $0x10] sm:$0xf]
    %v896 = vld [vmem:[#allocation5 + $0x14] sm:$0xf]
    %v897 = vld [vmem:[#allocation5 + $0x18] sm:$0xf]
    %v898 = vld [vmem:[#allocation5 + $0x1c] sm:$0xf]
    %v899 = vld [vmem:[#allocation5 + $0x20] sm:$0xf]
    %v900 = vld [vmem:[#allocation5 + $0x24] sm:$0xf]
    %v901 = vld [vmem:[#allocation5 + $0x28] sm:$0xf]
    %v902 = vld [vmem:[#allocation5 + $0x2c] sm:$0xf]
    %v903 = vld [vmem:[#allocation5 + $0x30] sm:$0xf]
    %v904 = vld [vmem:[#allocation5 + $0x34] sm:$0xf]
    %v905 = vld [vmem:[#allocation5 + $0x38] sm:$0xf]
    %v906 = vld [vmem:[#allocation5 + $0x3c] sm:$0xf]
    %v907 = vld [vmem:[%s10] sm:$0x1]
    %v909 = vlaneseq
    %v910 = vshrl.u32 %v909, 7
    %v911 = vsub.s32 0, %v910
    %v912 = vrot.slane %v907, %v911
    %v930 = vunpack.c.l.b16 %v891
    %v931 = vunpack.c.l.b16 %v892
    %v932 = vunpack.c.l.b16 %v893
    %v933 = vunpack.c.l.b16 %v894
    %v934 = vunpack.c.l.b16 %v895
    %v935 = vunpack.c.l.b16 %v896
    %v936 = vunpack.c.l.b16 %v897
    %v937 = vunpack.c.l.b16 %v898
    %v938 = vunpack.c.l.b16 %v899
    %v939 = vunpack.c.l.b16 %v900
    %v940 = vunpack.c.l.b16 %v901
    %v941 = vunpack.c.l.b16 %v902
    %v942 = vunpack.c.l.b16 %v903
    %v943 = vunpack.c.l.b16 %v904
    %v944 = vunpack.c.l.b16 %v905
    %v945 = vunpack.c.l.b16 %v906
    %v946 = vpack.c.b16 %v931, %v930
    %v947 = vpack.c.b16 %v933, %v932
    %v948 = vpack.c.b16 %v935, %v934
    %v949 = vpack.c.b16 %v937, %v936
    %v950 = vpack.c.b16 %v939, %v938
    %v951 = vpack.c.b16 %v941, %v940
    %v952 = vpack.c.b16 %v943, %v942
    %v953 = vpack.c.b16 %v945, %v944
    %962 = vmatprep.subr.bf16.mxu0 0
    %963 = vmatpush1.bf16.msra.mxu0 %v946
    %964 = vmatprep.subr.bf16.mxu0 0
    %965 = vmatpush1.bf16.msra.mxu0 %v947
    %966 = vmatprep.subr.bf16.mxu0 0
    %967 = vmatpush1.bf16.msra.mxu0 %v948
    %968 = vmatprep.subr.bf16.mxu0 0
    %969 = vmatpush1.bf16.msra.mxu0 %v949
    %970 = vmatprep.subr.bf16.mxu0 0
    %971 = vmatpush1.bf16.msra.mxu0 %v950
    %972 = vmatprep.subr.bf16.mxu0 0
    %973 = vmatpush1.bf16.msra.mxu0 %v951
    %974 = vmatprep.subr.bf16.mxu0 0
    %975 = vmatpush1.bf16.msra.mxu0 %v952
    %976 = vmatprep.subr.bf16.mxu0 0
    %977 = vmatpush1.bf16.msra.mxu0 %v953
    %978 = vmatprep.subr.bf16.mxu0 0
    %979 = vmatpush1.bf16.msra.mxu0 0
    %980 = vmatprep.subr.bf16.mxu0 0
    %981 = vmatpush1.bf16.msra.mxu0 0
    %982 = vmatprep.subr.bf16.mxu0 0
    %983 = vmatpush1.bf16.msra.mxu0 0
    %984 = vmatprep.subr.bf16.mxu0 0
    %985 = vmatpush1.bf16.msra.mxu0 0
    %986 = vmatprep.subr.bf16.mxu0 0
    %987 = vmatpush1.bf16.msra.mxu0 0
    %988 = vmatprep.subr.bf16.mxu0 0
    %989 = vmatpush1.bf16.msra.mxu0 0
    %990 = vmatprep.subr.bf16.mxu0 0
    %991 = vmatpush1.bf16.msra.mxu0 0
    %992 = vmatprep.subr.bf16.mxu0 0
    %993 = vmatpush1.bf16.msra.mxu0 0
    %994 = vmatprep.mubr.bf16.mxu0 0
    %995 = vmatmul.mubr.bf16.gmra.mrb[0].mxu0 %v887
    %v996 = vpop.f32.mrb[0].mxu0
    %v997 = vadd.f32 %v912, %v996
    %v998 = vpop.f32.mrb[0].mxu0
    %v999 = vpop.f32.mrb[0].mxu0
    %v1000 = vadd.f32 %v912, %v999
    %v1001 = vpop.f32.mrb[0].mxu0
    %1002 = vmatprep.mubr.bf16.mxu0 0
    %1003 = vmatmul.mubr.bf16.gmra.mrb[0].mxu0 %v888
    %v1004 = vpop.f32.mrb[0].mxu0
    %v1005 = vadd.f32 %v912, %v1004
    %v1006 = vpop.f32.mrb[0].mxu0
    %v1007 = vpop.f32.mrb[0].mxu0
    %v1008 = vadd.f32 %v912, %v1007
    %v1009 = vpop.f32.mrb[0].mxu0
    %1010 = vmatprep.mubr.bf16.mxu0 0
    %1011 = vmatmul.mubr.bf16.gmra.mrb[0].mxu0 %v889
    %v1012 = vpop.f32.mrb[0].mxu0
    %v1013 = vadd.f32 %v912, %v1012
    %v1014 = vpop.f32.mrb[0].mxu0
    %v1015 = vpop.f32.mrb[0].mxu0
    %v1016 = vadd.f32 %v912, %v1015
    %v1017 = vpop.f32.mrb[0].mxu0
    %1018 = vmatprep.mubr.bf16.mxu0 0
    %1019 = vmatmul.mubr.bf16.gmra.mrb[0].mxu0 %v890
    %v1020 = vpop.f32.mrb[0].mxu0
    %v1021 = vadd.f32 %v912, %v1020
    %v1022 = vpop.f32.mrb[0].mxu0
    %v1023 = vpop.f32.mrb[0].mxu0
    %v1024 = vadd.f32 %v912, %v1023
    %v1025 = vpop.f32.mrb[0].mxu0
    %1026 = vdwg.mxu0
    %v1027 = vadd.f32 %v571, %v997
    %v1028 = vadd.f32 %v572, %v1000
    %v1029 = vadd.f32 %v573, %v1005
    %v1030 = vadd.f32 %v574, %v1008
    %v1031 = vadd.f32 %v575, %v1013
    %v1032 = vadd.f32 %v576, %v1016
    %v1033 = vadd.f32 %v577, %v1021
    %v1034 = vadd.f32 %v578, %v1024
    %1035 = vst [vmem:[#allocation7] sm:$0xff] %v1027
    %1036 = vst [vmem:[#allocation7 + $0x8] sm:$0xff] %v1028
    %1037 = vst [vmem:[#allocation7 + $0x10] sm:$0xff] %v1029
    %1038 = vst [vmem:[#allocation7 + $0x18] sm:$0xff] %v1030
    %1039 = vst [vmem:[#allocation7 + $0x20] sm:$0xff] %v1031
    %1040 = vst [vmem:[#allocation7 + $0x28] sm:$0xff] %v1032
    %1041 = vst [vmem:[#allocation7 + $0x30] sm:$0xff] %v1033
    %1042 = vst [vmem:[#allocation7 + $0x38] sm:$0xff] %v1034
    // Predicated region
    $region54: #{tpu_custom_call.1} parent=1 // pred_check
      _
    $region55: #{tpu_custom_call.1} parent=1 // pred_check_branch
      %1044 = sbr.rel (0) target = $region57
    $region56: #{tpu_custom_call.1} parent=1 // pred_region
      %s1046 = ssub.s32 1024, 1024
      %1047 = vsyncadd [#allocation4], %s1046
      %s1048 = sshll.u32 [#allocation7], 4
      %s1049 = int_to_ptr.vmem [resolvable:$true] %s1048
      %1054 = dma.vmem_to_hbm [thread:$0]  %s1049, 1024, %s11, [#allocation4], 128, 128, 8
    $region57: #{tpu_custom_call.1} parent=1 // pred_fallthru
      _
    // Predicated region
    $region58: #{tpu_custom_call.1} parent=1 // pred_check
      _
    $region59: #{tpu_custom_call.1} parent=1 // pred_check_branch
      %1056 = sbr.rel (0) target = $region61
    $region60: #{tpu_custom_call.1} parent=1 // pred_region
      %1057 = dma.done [#allocation4], 1024
    $region61: #{tpu_custom_call.1} parent=1 // pred_fallthru
      _
    %1058 = vsyncpa [#allocation3], 1
    %1059 = vsyncpa [#allocation6], 1
    %1060 = vsyncpa [#allocation4], 1

</llo_original>
